<compile_context>
chip_gen: v6e
topology: v6e:2x2x1
jax: 0.10.0
libtpu: 0.0.40
codegen_flags: <defaults>
</compile_context>

<pallas_src>
import functools

import jax
import jax.numpy as jnp
from jax.experimental import pallas as pl
from jax.experimental.pallas import tpu as pltpu


def _round_up(x: int, m: int) -> int:
    return ((x + m - 1) // m) * m


# ----------------------------- Pallas kernel -------------------------------

def _fused_head_kernel(x_ref, w_ref, b_ref, k_ref, o_ref):
    """Fused 1x1 conv + bias + sigmoid + YOLO decode for one (pixel-tile, batch).

    x_ref: (cin_pad, TN)   bf16  input pixels (lane axis = flattened h*w)
    w_ref: (cout, cin_pad) bf16  1x1 conv weight   (VMEM resident)
    b_ref: (cout, 1)       f32   conv bias         (VMEM resident)
    k_ref: (2, cout, TN)   f32   decode constants: plane0 = ab, plane1 = gamma
    o_ref: (cout, TN)      f32   decoded output

        s   = sigmoid(W @ x + b)
        out = (s*s if wh-element else s) * ab + gamma
      xy       : ab = 2,           gamma = grid - 0.5   -> 2*s - 0.5 + grid
      wh       : ab = 4*anchor,    gamma = 0            -> anchor * (2*s)^2
      conf/cls : ab = 1,           gamma = 0            -> s
    wh elements are identified by ab >= 3 (anchors are in pixels, 4*anchor >= 48).
    """
    acc = jnp.dot(w_ref[...], x_ref[...], preferred_element_type=jnp.float32)
    s = jax.nn.sigmoid(acc + b_ref[...])
    ab = k_ref[0]
    gamma = k_ref[1]
    t = jnp.where(ab >= 3.0, s, 1.0) * s          # s^2 for wh elements, else s
    o_ref[...] = t * ab + gamma


# ----------------------------- wrappers -------------------------------------

def _decode_constants(anchor, h, w, no, na):
    """Batch-independent decode constants in the conv channel-major layout.

    Returns (2, cout, h*w) f32 with planes (ab, gamma).  The per-element role
    (x / y / w / h / conf / cls), grid offset and anchor come from the
    *row-major reinterpretation* of the conv output as (na, h, w, no) — i.e.
    exactly torch's `out.view(bs, na, h, w, -1)` on the NCHW conv output.

    NOTE: computing these in-kernel from broadcasted_iota + an SMEM anchor
    table would remove this operand's HBM stream entirely; kept host-side
    (loaded once across batch) for robustness.
    """
    hw = h * w
    cout = na * no
    f = jnp.arange(cout * hw, dtype=jnp.int32)      # within-batch flat = c*hw + p
    o = f % no                                       # channel index after .view()
    a = f // (hw * no)                               # anchor index after .view()
    q = (f // no) % hw                               # pixel index (y*w + x) after .view()
    gx = (q % w).astype(jnp.float32)
    gy = (q // w).astype(jnp.float32)

    is_x, is_y = (o == 0), (o == 1)
    is_w, is_h = (o == 2), (o == 3)
    is_xy = o < 2
    is_wh = is_w | is_h

    anchor = anchor.astype(jnp.float32)
    anc = jnp.where(is_w, anchor[a, 0], jnp.where(is_h, anchor[a, 1], 0.0))

    # ab fuses alpha (2 for xy, 1 for conf/cls, 0 for wh) with beta (4*anchor
    # for wh, 0 otherwise); distinguishable in-kernel because 4*anchor >= 3.
    ab = jnp.where(is_xy, 2.0, jnp.where(is_wh, 4.0 * anc, 1.0))
    gamma = jnp.where(is_x, gx - 0.5, jnp.where(is_y, gy - 0.5, 0.0))
    return jnp.stack([ab, gamma]).reshape(2, cout, hw)


def yolo_head_level(x_nchw, weight, bias, anchor, num_anchors, *, tn_max=2048):
    """One pyramid level: fused conv+decode, then pure-reshape layout plumbing
    back to the module's (class_score, bbox_pred, confidence_score) outputs."""
    bs, cin, h, w = x_nchw.shape
    cout = weight.shape[0]
    no = cout // num_anchors
    hw = h * w

    # Lane-dense pixel tiling (multiple of 128 -> unmasked stores) and bf16
    # sublane-friendly contraction dim (no-op at production channel counts).
    tn = min(tn_max, _round_up(hw, 128))
    hw_pad = _round_up(hw, tn)
    n_tiles = hw_pad // tn
    cin_pad = _round_up(cin, 16)

    # Native-layout (bs, cin, hw) view, bf16 for the MXU / halved HBM read.
    x_p = x_nchw.reshape(bs, cin, hw).astype(jnp.bfloat16)
    if hw_pad != hw or cin_pad != cin:
        x_p = jnp.pad(x_p, ((0, 0), (0, cin_pad - cin), (0, hw_pad - hw)))
    w_p = weight.astype(jnp.bfloat16)
    if cin_pad != cin:
        w_p = jnp.pad(w_p, ((0, 0), (0, cin_pad - cin)))
    b_p = bias.reshape(cout, 1).astype(jnp.float32)

    k = _decode_constants(anchor, h, w, no, num_anchors)          # (2, cout, hw)
    if hw_pad != hw:
        k = jnp.pad(k, ((0, 0), (0, 0), (0, hw_pad - hw)))

    # Double-buffered per-step working set -> explicit VMEM limit.
    blk_bytes = cin_pad * tn * 2 + 2 * cout * tn * 4 + cout * tn * 4
    resident = cout * cin_pad * 2 + cout * 4
    vmem_limit = int(min(100 << 20, max(32 << 20, 2 * (2 * blk_bytes + resident))))

    # Grid: pixel-tile outer, batch inner -> the decode-constant block index
    # is unchanged across the inner batch steps, so it is DMA'd once per tile.
    grid = (n_tiles, bs)

    dec = pl.pallas_call(
        _fused_head_kernel,
        out_shape=jax.ShapeDtypeStruct((bs, cout, hw_pad), jnp.float32),
        grid_spec=pltpu.PrefetchScalarGridSpec(
            num_scalar_prefetch=0,
            grid=grid,
            in_specs=[
                pl.BlockSpec((None, cin_pad, tn), lambda j, b: (b, 0, j)),
                pl.BlockSpec((cout, cin_pad), lambda j, b: (0, 0)),
                pl.BlockSpec((cout, 1), lambda j, b: (0, 0)),
                pl.BlockSpec((2, cout, tn), lambda j, b: (0, 0, j)),
            ],
            out_specs=pl.BlockSpec((None, cout, tn), lambda j, b: (b, 0, j)),
        ),
        compiler_params=pltpu.CompilerParams(
            dimension_semantics=("parallel", "parallel"),
            vmem_limit_bytes=vmem_limit,
        ),
        cost_estimate=pl.CostEstimate(
            flops=2 * cout * cin_pad * bs * hw_pad + 4 * cout * bs * hw_pad,
            transcendentals=cout * bs * hw_pad,
            bytes_accessed=(2 * bs * cin_pad * hw_pad      # bf16 x read
                            + 2 * cout * cin_pad           # bf16 weight
                            + 4 * cout                     # bias
                            + 4 * 2 * cout * hw_pad        # decode constants (once)
                            + 4 * bs * cout * hw_pad),     # f32 output write
        ),
    )(x_p, w_p, b_p, k)

    # Pure layout plumbing: slice off the lane padding and reinterpret the
    # contiguous (cout, hw) slab exactly like torch's .view(bs, na, h, w, -1).
    pred = dec[..., :hw] if hw_pad != hw else dec
    pred = pred.reshape(bs, num_anchors, h, w, no)
    class_score = pred[..., 5:]
    bbox_pred = pred[..., :4]
    confidence = pred[..., 4:5]
    return class_score, bbox_pred, confidence


def yolov4_head_forward(xs, params, anchors, num_anchors=3):
    """xs: list of NCHW feature maps; params: list of (weight, bias);
    anchors: (num_levels, num_anchors, 2)."""
    class_scores, bbox_preds, confidences = [], [], []
    for i, (x, (wgt, b)) in enumerate(zip(xs, params)):
        cls, bbox, conf = yolo_head_level(x, wgt, b, anchors[i], num_anchors)
        class_scores.append(cls)
        bbox_preds.append(bbox)
        confidences.append(conf)
    return class_scores, bbox_preds, confidences


# ----------------------------- pure-JAX reference ---------------------------

def reference_forward(xs, params, anchors, num_anchors=3):
    outs = []
    for x, (wgt, b), anc in zip(xs, params, anchors):
        bs, cin, h, w = x.shape
        cout = wgt.shape[0]
        no = cout // num_anchors
        o = jnp.einsum("oc,bchw->bohw", wgt, x,
                       precision=jax.lax.Precision.HIGHEST) + b.reshape(1, cout, 1, 1)
        o = o.reshape(bs, num_anchors, h, w, no)      # raw reinterpretation == torch .view
        s = jax.nn.sigmoid(o)
        gx = jnp.arange(w, dtype=jnp.float32).reshape(1, 1, 1, w)
        gy = jnp.arange(h, dtype=jnp.float32).reshape(1, 1, h, 1)
        bx = 2.0 * s[..., 0] - 0.5 + gx
        by = 2.0 * s[..., 1] - 0.5 + gy
        aw = anc[:, 0].reshape(1, num_anchors, 1, 1)
        ah = anc[:, 1].reshape(1, num_anchors, 1, 1)
        bw = aw * (2.0 * s[..., 2]) ** 2
        bh = ah * (2.0 * s[..., 3]) ** 2
        bbox = jnp.stack(
            [jnp.broadcast_to(bx, (bs, num_anchors, h, w)),
             jnp.broadcast_to(by, (bs, num_anchors, h, w)),
             bw, bh],
            axis=-1,
        )
        outs.append((s[..., 5:], bbox, s[..., 4:5]))
    return outs


# ----------------------------- main ------------------------------------------

if __name__ == "__main__":
    # Small configuration consistent with the module's constructor.
    in_channels = (4, 8, 16)
    num_classes = 3
    num_anchors = 3
    num_outputs = 5 + num_classes                     # 8
    cout = num_anchors * num_outputs                  # 24
    anchors = jnp.asarray(
        [[[12, 16], [19, 36], [40, 28]],
         [[36, 75], [76, 55], [72, 146]],
         [[142, 110], [192, 243], [459, 401]]],
        dtype=jnp.float32,
    )

    key = jax.random.PRNGKey(0)
    bs = 2
    spatials = (16, 8, 4)

    # Deterministic synthetic 1x1-conv weights / biases (nn.Conv2d -> (cout, cin)).
    xs, params = [], []
    for cin, hw in zip(in_channels, spatials):
        key, kx, kw, kb = jax.random.split(key, 4)
        xs.append(jax.random.normal(kx, (bs, cin, hw, hw), dtype=jnp.float32))
        wgt = 0.1 * jax.random.normal(kw, (cout, cin), dtype=jnp.float32)
        bias = 0.05 * jax.random.normal(kb, (cout,), dtype=jnp.float32)
        params.append((wgt, bias))

    # Single jit over all three pyramid levels (3 fused pallas_calls total).
    fwd = jax.jit(functools.partial(yolov4_head_forward, num_anchors=num_anchors))
    cls_list, bbox_list, conf_list = fwd(xs, params, anchors)
    for t in cls_list + bbox_list + conf_list:
        jax.block_until_ready(t)

    # Sanity check against a pure-f32 reference of the same math.  The kernel
    # feeds the MXU bf16 inputs (per perf review), so tolerances account for
    # bf16 input rounding amplified by the anchor*(2s)^2 decode (anchors <= 459).
    refs = reference_forward(xs, params, anchors, num_anchors)
    for lvl, (rcls, rbbox, rconf) in enumerate(refs):
        assert jnp.allclose(cls_list[lvl], rcls, rtol=2e-2, atol=2e-2)
        assert jnp.allclose(bbox_list[lvl], rbbox, rtol=2e-2, atol=2e-2)
        assert jnp.allclose(conf_list[lvl], rconf, rtol=2e-2, atol=2e-2)

    print("KERNEL_OK")
</pallas_src>

<mosaic_0001>
module attributes {stable_mosaic.version = 11 : i64} {
  func.func @_fused_head_kernel(%arg0: i32, %arg1: i32, %arg2: memref<1x16x256xbf16, #tpu.memory_space<vmem>>, %arg3: memref<24x16xbf16, #tpu.memory_space<vmem>>, %arg4: memref<24x1xf32, #tpu.memory_space<vmem>>, %arg5: memref<2x24x256xf32, #tpu.memory_space<vmem>>, %arg6: memref<1x24x256xf32, #tpu.memory_space<vmem>>) attributes {dimension_semantics = [#tpu.dimension_semantics<parallel>, #tpu.dimension_semantics<parallel>], iteration_bounds = array<i64: 1, 2>, scalar_prefetch = 0 : i64, scratch_operands = 0 : i64, tpu.core_type = #tpu.core_type<tc>, window_params = [{transform_indices = @transform_0, window_bounds = array<i64: 1, 16, 256>}, {pipeline_mode = #tpu.pipeline_mode<synchronous>, transform_indices = @transform_1, window_bounds = array<i64: 24, 16>}, {pipeline_mode = #tpu.pipeline_mode<synchronous>, transform_indices = @transform_2, window_bounds = array<i64: 24, 1>}, {transform_indices = @transform_3, window_bounds = array<i64: 2, 24, 256>}, {transform_indices = @transform_4, window_bounds = array<i64: 1, 24, 256>}]} {
    %c0 = arith.constant 0 : index
    %c0_0 = arith.constant 0 : index
    %0 = vector.load %arg3[%c0, %c0_0] : memref<24x16xbf16, #tpu.memory_space<vmem>>, vector<24x16xbf16>
    %c0_1 = arith.constant 0 : index
    %c0_2 = arith.constant 0 : index
    %c0_3 = arith.constant 0 : index
    %1 = vector.load %arg2[%c0_1, %c0_2, %c0_3] : memref<1x16x256xbf16, #tpu.memory_space<vmem>>, vector<1x16x256xbf16>
    %2 = vector.shape_cast %1 : vector<1x16x256xbf16> to vector<16x256xbf16>
    %cst = arith.constant dense<0.000000e+00> : vector<24x256xf32>
    %3 = tpu.matmul %0, %2, %cst {dimension_numbers = #tpu.dot_dimension_numbers<[1], [0], [0], [1], [0, 0, 1, 1], [], []>} : vector<24x16xbf16>, vector<16x256xbf16>, vector<24x256xf32> -> vector<24x256xf32>
    %c0_4 = arith.constant 0 : index
    %c0_5 = arith.constant 0 : index
    %4 = vector.load %arg4[%c0_4, %c0_5] : memref<24x1xf32, #tpu.memory_space<vmem>>, vector<24x1xf32>
    %5 = vector.broadcast %4 : vector<24x1xf32> to vector<24x256xf32>
    %6 = arith.addf %3, %5 : vector<24x256xf32>
    %7 = arith.negf %6 : vector<24x256xf32>
    %8 = math.exp %7 : vector<24x256xf32>
    %cst_6 = arith.constant 1.000000e+00 : f32
    %9 = vector.broadcast %cst_6 : f32 to vector<24x256xf32>
    %10 = arith.addf %9, %8 : vector<24x256xf32>
    %11 = arith.divf %9, %10 : vector<24x256xf32>
    %c0_7 = arith.constant 0 : index
    %c0_8 = arith.constant 0 : index
    %c0_9 = arith.constant 0 : index
    %12 = vector.load %arg5[%c0_7, %c0_8, %c0_9] : memref<2x24x256xf32, #tpu.memory_space<vmem>>, vector<1x24x256xf32>
    %13 = vector.shape_cast %12 : vector<1x24x256xf32> to vector<24x256xf32>
    %c1 = arith.constant 1 : index
    %c0_10 = arith.constant 0 : index
    %c0_11 = arith.constant 0 : index
    %14 = vector.load %arg5[%c1, %c0_10, %c0_11] : memref<2x24x256xf32, #tpu.memory_space<vmem>>, vector<1x24x256xf32>
    %15 = vector.shape_cast %14 : vector<1x24x256xf32> to vector<24x256xf32>
    %cst_12 = arith.constant 3.000000e+00 : f32
    %16 = vector.broadcast %cst_12 : f32 to vector<24x256xf32>
    %17 = arith.cmpf oge, %13, %16 : vector<24x256xf32>
    %cst_13 = arith.constant 1.000000e+00 : f32
    %18 = vector.broadcast %cst_13 : f32 to vector<24x256xf32>
    %19 = arith.select %17, %11, %18 : vector<24x256xi1>, vector<24x256xf32>
    %20 = arith.mulf %19, %11 : vector<24x256xf32>
    %21 = arith.mulf %20, %13 : vector<24x256xf32>
    %22 = arith.addf %21, %15 : vector<24x256xf32>
    %c0_14 = arith.constant 0 : index
    %c0_15 = arith.constant 0 : index
    %c0_16 = arith.constant 0 : index
    %23 = vector.load %arg6[%c0_14, %c0_15, %c0_16] : memref<1x24x256xf32, #tpu.memory_space<vmem>>, vector<1x24x256xf32>
    %24 = vector.shape_cast %23 : vector<1x24x256xf32> to vector<24x256xf32>
    %25 = vector.shape_cast %22 : vector<24x256xf32> to vector<1x24x256xf32>
    tpu.vector_store %arg6[%c0_14, %c0_15, %c0_16], %25 {strides = array<i32>} : memref<1x24x256xf32, #tpu.memory_space<vmem>>, vector<1x24x256xf32>,
    return
  }
  func.func @transform_0(%arg0: i32, %arg1: i32) -> (i32, i32, i32) {
    %c0_i32 = arith.constant 0 : i32
    %c0_i32_0 = arith.constant 0 : i32
    return %arg1, %c0_i32, %arg0 : i32, i32, i32
  }
  func.func @transform_1(%arg0: i32, %arg1: i32) -> (i32, i32) {
    %c0_i32 = arith.constant 0 : i32
    %c0_i32_0 = arith.constant 0 : i32
    %c0_i32_1 = arith.constant 0 : i32
    return %c0_i32, %c0_i32_0 : i32, i32
  }
  func.func @transform_2(%arg0: i32, %arg1: i32) -> (i32, i32) {
    %c0_i32 = arith.constant 0 : i32
    %c0_i32_0 = arith.constant 0 : i32
    %c0_i32_1 = arith.constant 0 : i32
    return %c0_i32, %c0_i32_0 : i32, i32
  }
  func.func @transform_3(%arg0: i32, %arg1: i32) -> (i32, i32, i32) {
    %c0_i32 = arith.constant 0 : i32
    %c0_i32_0 = arith.constant 0 : i32
    %c0_i32_1 = arith.constant 0 : i32
    return %c0_i32, %c0_i32_0, %arg0 : i32, i32, i32
  }
  func.func @transform_4(%arg0: i32, %arg1: i32) -> (i32, i32, i32) {
    %c0_i32 = arith.constant 0 : i32
    %c0_i32_0 = arith.constant 0 : i32
    return %arg1, %c0_i32, %arg0 : i32, i32, i32
  }
}

module attributes {stable_mosaic.version = 11 : i64} {
  func.func @_fused_head_kernel(%arg0: i32, %arg1: i32, %arg2: memref<1x16x128xbf16, #tpu.memory_space<vmem>>, %arg3: memref<24x16xbf16, #tpu.memory_space<vmem>>, %arg4: memref<24x1xf32, #tpu.memory_space<vmem>>, %arg5: memref<2x24x128xf32, #tpu.memory_space<vmem>>, %arg6: memref<1x24x128xf32, #tpu.memory_space<vmem>>) attributes {dimension_semantics = [#tpu.dimension_semantics<parallel>, #tpu.dimension_semantics<parallel>], iteration_bounds = array<i64: 1, 2>, scalar_prefetch = 0 : i64, scratch_operands = 0 : i64, tpu.core_type = #tpu.core_type<tc>, window_params = [{transform_indices = @transform_0, window_bounds = array<i64: 1, 16, 128>}, {pipeline_mode = #tpu.pipeline_mode<synchronous>, transform_indices = @transform_1, window_bounds = array<i64: 24, 16>}, {pipeline_mode = #tpu.pipeline_mode<synchronous>, transform_indices = @transform_2, window_bounds = array<i64: 24, 1>}, {transform_indices = @transform_3, window_bounds = array<i64: 2, 24, 128>}, {transform_indices = @transform_4, window_bounds = array<i64: 1, 24, 128>}]} {
    %c0 = arith.constant 0 : index
    %c0_0 = arith.constant 0 : index
    %0 = vector.load %arg3[%c0, %c0_0] : memref<24x16xbf16, #tpu.memory_space<vmem>>, vector<24x16xbf16>
    %c0_1 = arith.constant 0 : index
    %c0_2 = arith.constant 0 : index
    %c0_3 = arith.constant 0 : index
    %1 = vector.load %arg2[%c0_1, %c0_2, %c0_3] : memref<1x16x128xbf16, #tpu.memory_space<vmem>>, vector<1x16x128xbf16>
    %2 = vector.shape_cast %1 : vector<1x16x128xbf16> to vector<16x128xbf16>
    %cst = arith.constant dense<0.000000e+00> : vector<24x128xf32>
    %3 = tpu.matmul %0, %2, %cst {dimension_numbers = #tpu.dot_dimension_numbers<[1], [0], [0], [1], [0, 0, 1, 1], [], []>} : vector<24x16xbf16>, vector<16x128xbf16>, vector<24x128xf32> -> vector<24x128xf32>
    %c0_4 = arith.constant 0 : index
    %c0_5 = arith.constant 0 : index
    %4 = vector.load %arg4[%c0_4, %c0_5] : memref<24x1xf32, #tpu.memory_space<vmem>>, vector<24x1xf32>
    %5 = vector.broadcast %4 : vector<24x1xf32> to vector<24x128xf32>
    %6 = arith.addf %3, %5 : vector<24x128xf32>
    %7 = arith.negf %6 : vector<24x128xf32>
    %8 = math.exp %7 : vector<24x128xf32>
    %cst_6 = arith.constant 1.000000e+00 : f32
    %9 = vector.broadcast %cst_6 : f32 to vector<24x128xf32>
    %10 = arith.addf %9, %8 : vector<24x128xf32>
    %11 = arith.divf %9, %10 : vector<24x128xf32>
    %c0_7 = arith.constant 0 : index
    %c0_8 = arith.constant 0 : index
    %c0_9 = arith.constant 0 : index
    %12 = vector.load %arg5[%c0_7, %c0_8, %c0_9] : memref<2x24x128xf32, #tpu.memory_space<vmem>>, vector<1x24x128xf32>
    %13 = vector.shape_cast %12 : vector<1x24x128xf32> to vector<24x128xf32>
    %c1 = arith.constant 1 : index
    %c0_10 = arith.constant 0 : index
    %c0_11 = arith.constant 0 : index
    %14 = vector.load %arg5[%c1, %c0_10, %c0_11] : memref<2x24x128xf32, #tpu.memory_space<vmem>>, vector<1x24x128xf32>
    %15 = vector.shape_cast %14 : vector<1x24x128xf32> to vector<24x128xf32>
    %cst_12 = arith.constant 3.000000e+00 : f32
    %16 = vector.broadcast %cst_12 : f32 to vector<24x128xf32>
    %17 = arith.cmpf oge, %13, %16 : vector<24x128xf32>
    %cst_13 = arith.constant 1.000000e+00 : f32
    %18 = vector.broadcast %cst_13 : f32 to vector<24x128xf32>
    %19 = arith.select %17, %11, %18 : vector<24x128xi1>, vector<24x128xf32>
    %20 = arith.mulf %19, %11 : vector<24x128xf32>
    %21 = arith.mulf %20, %13 : vector<24x128xf32>
    %22 = arith.addf %21, %15 : vector<24x128xf32>
    %c0_14 = arith.constant 0 : index
    %c0_15 = arith.constant 0 : index
    %c0_16 = arith.constant 0 : index
    %23 = vector.load %arg6[%c0_14, %c0_15, %c0_16] : memref<1x24x128xf32, #tpu.memory_space<vmem>>, vector<1x24x128xf32>
    %24 = vector.shape_cast %23 : vector<1x24x128xf32> to vector<24x128xf32>
    %25 = vector.shape_cast %22 : vector<24x128xf32> to vector<1x24x128xf32>
    tpu.vector_store %arg6[%c0_14, %c0_15, %c0_16], %25 {strides = array<i32>} : memref<1x24x128xf32, #tpu.memory_space<vmem>>, vector<1x24x128xf32>,
    return
  }
  func.func @transform_0(%arg0: i32, %arg1: i32) -> (i32, i32, i32) {
    %c0_i32 = arith.constant 0 : i32
    %c0_i32_0 = arith.constant 0 : i32
    return %arg1, %c0_i32, %arg0 : i32, i32, i32
  }
  func.func @transform_1(%arg0: i32, %arg1: i32) -> (i32, i32) {
    %c0_i32 = arith.constant 0 : i32
    %c0_i32_0 = arith.constant 0 : i32
    %c0_i32_1 = arith.constant 0 : i32
    return %c0_i32, %c0_i32_0 : i32, i32
  }
  func.func @transform_2(%arg0: i32, %arg1: i32) -> (i32, i32) {
    %c0_i32 = arith.constant 0 : i32
    %c0_i32_0 = arith.constant 0 : i32
    %c0_i32_1 = arith.constant 0 : i32
    return %c0_i32, %c0_i32_0 : i32, i32
  }
  func.func @transform_3(%arg0: i32, %arg1: i32) -> (i32, i32, i32) {
    %c0_i32 = arith.constant 0 : i32
    %c0_i32_0 = arith.constant 0 : i32
    %c0_i32_1 = arith.constant 0 : i32
    return %c0_i32, %c0_i32_0, %arg0 : i32, i32, i32
  }
  func.func @transform_4(%arg0: i32, %arg1: i32) -> (i32, i32, i32) {
    %c0_i32 = arith.constant 0 : i32
    %c0_i32_0 = arith.constant 0 : i32
    return %arg1, %c0_i32, %arg0 : i32, i32, i32
  }
}

</mosaic_0001>

<llo_original>
// kernel: yolov4_head_forward.3
$region0: #{yolov4_head_forward.3}
  #allocation0 [shape = 'u32[]', space=smem, size = 0x4, offset = 0x4, fixed_abs, tag = 'smem constant byte address 0x4 - core index']
  #allocation1 [shape = 'u32[144,128]{1,0:T(1,128)}', space=vmem, size = 0x12000, scoped, tag = 'internal scratch']
  %s0 = inlined_call_operand.vmem [shape: bf16[2,16,256], index: 0, kind: input, shape index: {}]
  %s1 = inlined_call_operand.vmem [shape: bf16[24,16], index: 1, kind: input, shape index: {}]
  %s2 = inlined_call_operand.vmem [shape: f32[24,1], index: 2, kind: input, shape index: {}]
  %s3 = inlined_call_operand.vmem [shape: f32[2,24,256], index: 3, kind: input, shape index: {}]
  %s4 = inlined_call_operand.vmem [shape: f32[2,24,256], index: 4, kind: output, shape index: {}]
  %s5 = sld [smem:[#allocation0]]
  $region49: #{yolov4_head_forward.3} parent=0
    _
  %s7 = ssub.s32 1, %s5
  %s8 = scalar_select 0, %s7, %s5
  loop: start=0, step=1, limit=4
  $region2: #{yolov4_head_forward.3} parent=0 // loop_pre_header
    _
  $region3: #{yolov4_head_forward.3} parent=0 // loop_header
    %s10 = sphi 0, %s14
    %p11 = scmp.ge.s32.totalorder %s10, 4
    %s17 = sphi 0, %s29
    %s18 = sphi 0, %s25
    %s19 = sphi 0, %s17
    %s20 = sphi 0, %s18
    %s21 = sphi 0, %s19
    %s22 = sphi 0, %s20
    %s34 = sphi 0, %s36
    %s37 = sphi 0, %s34
    %s38 = sphi 0, %s37
    %s54 = sphi 0, %s38
    %s58 = sphi 0, %s58
    %s60 = sphi 0, %s58
    %s61 = sphi 0, %s60
    %s75 = sphi 0, %s61
    %s79 = sphi 0, %s79
    %s81 = sphi 0, %s79
    %s82 = sphi 0, %s81
    %s96 = sphi 0, %s82
    %s102 = sphi 0, %s104
    %s105 = sphi 0, %s102
    %s106 = sphi 0, %s105
    %s122 = sphi 0, %s106
    %s130 = sphi 0, %s132
    %s133 = sphi 0, %s130
    %s134 = sphi 0, %s133
    %s150 = sphi 0, %s134
  $region4: #{yolov4_head_forward.3} parent=0 // loop_header_branch
    %13 = sbr.rel (%p11) target = $region8
  $region5: #{yolov4_head_forward.3} parent=0 // loop_body
    %s15 = ssub.s32 %s10, 1
    %s16 = ssub.s32 %s10, 2
    %s23 = sadd.s32 1, %s18
    %p24 = scmp.ge.s32.totalorder %s23, 2
    %s25 = scalar_select %p24, 0, %s23
    %s26 = sadd.s32 1, %s17
    %s27 = scalar_select %p24, %s26, %s17
    %p28 = scmp.ge.s32.totalorder %s27, 1
    %s29 = scalar_select %p28, 0, %s27
    %s30 = ssub.s32 %s18, %s25
    %s31 = ssub.s32 %s17, %s29
    %s32 = sor.u32 %s30, %s31
    %p33 = scmp.eq.s32.totalorder %s32, 0
    %s35 = sadd.s32 %s34, 1
    %s36 = scalar_select %p33, %s34, %s35
    %p39 = pneg %p33
    %p40 = scmp.eq.s32.totalorder %s10, 1
    %p41 = por %p39, %p40
    %p42 = scmp.ne.s32.totalorder %s34, %s37
    %p43 = scmp.eq.s32.totalorder %s10, 0
    %p44 = por %p42, %p43
    %p45 = scmp.ne.s32.totalorder %s34, %s37
    %p46 = scmp.eq.s32.totalorder %s15, 1
    %p47 = por %p45, %p46
    %p48 = scmp.ne.s32.totalorder %s37, %s38
    %p49 = scmp.eq.s32.totalorder %s15, 0
    %p50 = por %p48, %p49
    %p51 = scmp.ne.s32.totalorder %s37, %s38
    %p52 = scmp.eq.s32.totalorder %s16, 1
    %p53 = por %p51, %p52
    %p55 = scmp.ne.s32.totalorder %s38, %s54
    %p56 = scmp.eq.s32.totalorder %s16, 0
    %p57 = por %p55, %p56
    %s59 = sadd.s32 %s58, 1
    %p62 = scmp.eq.s32.totalorder %s10, 1
    %p63 = scmp.ne.s32.totalorder %s58, %s60
    %p64 = scmp.eq.s32.totalorder %s10, 0
    %p65 = por %p63, %p64
    %p66 = scmp.ne.s32.totalorder %s58, %s60
    %p67 = scmp.eq.s32.totalorder %s15, 1
    %p68 = por %p66, %p67
    %p69 = scmp.ne.s32.totalorder %s60, %s61
    %p70 = scmp.eq.s32.totalorder %s15, 0
    %p71 = por %p69, %p70
    %p72 = scmp.ne.s32.totalorder %s60, %s61
    %p73 = scmp.eq.s32.totalorder %s16, 1
    %p74 = por %p72, %p73
    %p76 = scmp.ne.s32.totalorder %s61, %s75
    %p77 = scmp.eq.s32.totalorder %s16, 0
    %p78 = por %p76, %p77
    %s80 = sadd.s32 %s79, 1
    %p83 = scmp.eq.s32.totalorder %s10, 1
    %p84 = scmp.ne.s32.totalorder %s79, %s81
    %p85 = scmp.eq.s32.totalorder %s10, 0
    %p86 = por %p84, %p85
    %p87 = scmp.ne.s32.totalorder %s79, %s81
    %p88 = scmp.eq.s32.totalorder %s15, 1
    %p89 = por %p87, %p88
    %p90 = scmp.ne.s32.totalorder %s81, %s82
    %p91 = scmp.eq.s32.totalorder %s15, 0
    %p92 = por %p90, %p91
    %p93 = scmp.ne.s32.totalorder %s81, %s82
    %p94 = scmp.eq.s32.totalorder %s16, 1
    %p95 = por %p93, %p94
    %p97 = scmp.ne.s32.totalorder %s82, %s96
    %p98 = scmp.eq.s32.totalorder %s16, 0
    %p99 = por %p97, %p98
    %s100 = ssub.s32 %s17, %s29
    %p101 = scmp.eq.s32.totalorder %s100, 0
    %s103 = sadd.s32 %s102, 1
    %s104 = scalar_select %p101, %s102, %s103
    %p107 = pneg %p101
    %p108 = scmp.eq.s32.totalorder %s10, 1
    %p109 = por %p107, %p108
    %p110 = scmp.ne.s32.totalorder %s102, %s105
    %p111 = scmp.eq.s32.totalorder %s10, 0
    %p112 = por %p110, %p111
    %p113 = scmp.ne.s32.totalorder %s102, %s105
    %p114 = scmp.eq.s32.totalorder %s15, 1
    %p115 = por %p113, %p114
    %p116 = scmp.ne.s32.totalorder %s105, %s106
    %p117 = scmp.eq.s32.totalorder %s15, 0
    %p118 = por %p116, %p117
    %p119 = scmp.ne.s32.totalorder %s105, %s106
    %p120 = scmp.eq.s32.totalorder %s16, 1
    %p121 = por %p119, %p120
    %p123 = scmp.ne.s32.totalorder %s106, %s122
    %p124 = scmp.eq.s32.totalorder %s16, 0
    %p125 = por %p123, %p124
    %s126 = ssub.s32 %s18, %s25
    %s127 = ssub.s32 %s17, %s29
    %s128 = sor.u32 %s126, %s127
    %p129 = scmp.eq.s32.totalorder %s128, 0
    %s131 = sadd.s32 %s130, 1
    %s132 = scalar_select %p129, %s130, %s131
    %p135 = pneg %p129
    %p136 = scmp.eq.s32.totalorder %s10, 1
    %p137 = por %p135, %p136
    %p138 = scmp.ne.s32.totalorder %s130, %s133
    %p139 = scmp.eq.s32.totalorder %s10, 0
    %p140 = por %p138, %p139
    %p141 = scmp.ne.s32.totalorder %s130, %s133
    %p142 = scmp.eq.s32.totalorder %s15, 1
    %p143 = por %p141, %p142
    %p144 = scmp.ne.s32.totalorder %s133, %s134
    %p145 = scmp.eq.s32.totalorder %s15, 0
    %p146 = por %p144, %p145
    %p147 = scmp.ne.s32.totalorder %s133, %s134
    %p148 = scmp.eq.s32.totalorder %s16, 1
    %p149 = por %p147, %p148
    %p151 = scmp.ne.s32.totalorder %s134, %s150
    %p152 = scmp.eq.s32.totalorder %s16, 0
    %p153 = por %p151, %p152
    %p154 = scmp.le.s32.totalorder 1, %s10
    %p155 = scmp.lt.s32.totalorder %s10, 3
    %p156 = pnand %p154, %p155
    %p157 = pneg %p156
    // Predicated region
    $region9: #{yolov4_head_forward.3} parent=5 // pred_check
      _
    $region10: #{yolov4_head_forward.3} parent=5 // pred_check_branch
      %159 = sbr.rel (%p156) target = $region12
    $region11: #{yolov4_head_forward.3} parent=5 // pred_region
      %s160 = ssub.s32 %s10, 1
      // Predicated region
      $region13: #{yolov4_head_forward.3} parent=11 // pred_check
        %p161 = pneg %p71
      $region14: #{yolov4_head_forward.3} parent=11 // pred_check_branch
        %163 = sbr.rel (%p161) target = $region16
      $region15: #{yolov4_head_forward.3} parent=11 // pred_region
        _
      $region16: #{yolov4_head_forward.3} parent=11 // pred_fallthru
        _
      // Predicated region
      $region17: #{yolov4_head_forward.3} parent=11 // pred_check
        %p164 = pneg %p92
      $region18: #{yolov4_head_forward.3} parent=11 // pred_check_branch
        %166 = sbr.rel (%p164) target = $region20
      $region19: #{yolov4_head_forward.3} parent=11 // pred_region
        _
      $region20: #{yolov4_head_forward.3} parent=11 // pred_fallthru
        _
      // Predicated region
      $region21: #{yolov4_head_forward.3} parent=11 // pred_check
        %p167 = pneg %p118
      $region22: #{yolov4_head_forward.3} parent=11 // pred_check_branch
        %169 = sbr.rel (%p167) target = $region24
      $region23: #{yolov4_head_forward.3} parent=11 // pred_region
        %s170 = smul.u32 2, %s19
        %p171 = scmp.lt.s32.totalorder %s170, 1
        %s172 = scalar_select %p171, %s170, 1
        %s173 = smul.addr %s172, 8
        %s174 = scalar_lea.vmem %s3, %s173
        %s175 = smul.u32 2, %s19
      $region24: #{yolov4_head_forward.3} parent=11 // pred_fallthru
        _
    $region12: #{yolov4_head_forward.3} parent=5 // pred_fallthru
      _
    %p176 = scmp.lt.s32.totalorder %s10, 2
    // Predicated region
    $region25: #{yolov4_head_forward.3} parent=5 // pred_check
      %p177 = pneg %p176
    $region26: #{yolov4_head_forward.3} parent=5 // pred_check_branch
      %179 = sbr.rel (%p177) target = $region28
    $region27: #{yolov4_head_forward.3} parent=5 // pred_region
      // Predicated region
      $region29: #{yolov4_head_forward.3} parent=27 // pred_check
        %p180 = pneg %p44
      $region30: #{yolov4_head_forward.3} parent=27 // pred_check_branch
        %182 = sbr.rel (%p180) target = $region32
      $region31: #{yolov4_head_forward.3} parent=27 // pred_region
        %s183 = smul.u32 2, %s17
        %p184 = scmp.lt.s32.totalorder %s18, 1
        %s185 = scalar_select %p184, %s18, 1
        %p186 = scmp.lt.s32.totalorder %s183, 1
        %s187 = scalar_select %p186, %s183, 1
        %s188 = smul.addr %s185, 4
        %s189 = sadd.s32 %s187, %s188
        %s190 = smul.addr %s189, 4
        %s191 = scalar_lea.vmem %s0, %s190
        %s192 = smul.u32 2, %s17
      $region32: #{yolov4_head_forward.3} parent=27 // pred_fallthru
        _
    $region28: #{yolov4_head_forward.3} parent=5 // pred_fallthru
      _
    %p193 = scmp.le.s32.totalorder 1, %s10
    %p194 = scmp.lt.s32.totalorder %s10, 3
    %p195 = pnand %p193, %p194
    %p196 = pneg %p195
    // Predicated region
    $region33: #{yolov4_head_forward.3} parent=5 // pred_check
      _
    $region34: #{yolov4_head_forward.3} parent=5 // pred_check_branch
      %198 = sbr.rel (%p195) target = $region36
    $region35: #{yolov4_head_forward.3} parent=5 // pred_region
      %s199 = ssub.s32 %s10, 1
      %s200 = smul.u32 2, %s19
      %p201 = scmp.lt.s32.totalorder %s20, 1
      %s202 = scalar_select %p201, %s20, 1
      %p203 = scmp.lt.s32.totalorder %s200, 1
      %s204 = scalar_select %p203, %s200, 1
      %s205 = smul.addr %s202, 4
      %s206 = sadd.s32 %s204, %s205
      %s207 = smul.addr %s206, 4
      %s208 = scalar_lea.vmem %s0, %s207
      %p209 = pneg %p50
      %p210 = pneg %p47
      %p211 = pneg %p71
      %p212 = pneg %p68
      %p213 = pneg %p92
      %p214 = pneg %p89
      %s215 = smul.u32 2, %s19
      %p216 = scmp.lt.s32.totalorder %s215, 1
      %s217 = scalar_select %p216, %s215, 1
      %s218 = smul.addr %s217, 8
      %s219 = scalar_lea.vmem %s3, %s218
      %p220 = pneg %p118
      %p221 = pneg %p115
      %p222 = pneg %p146
      %p223 = pneg %p143
      %s224 = smul.u32 2, %s19
      %p225 = scmp.lt.s32.totalorder %s20, 1
      %s226 = scalar_select %p225, %s20, 1
      %p227 = scmp.lt.s32.totalorder %s224, 1
      %s228 = scalar_select %p227, %s224, 1
      %s229 = smul.addr %s226, 6
      %s230 = sadd.s32 %s228, %s229
      %s231 = smul.addr %s230, 8
      %s232 = scalar_lea.vmem %s4, %s231
      %s233 = smul.u32 2, %s19
      %p234 = scmp.lt.s32.totalorder %s20, 1
      %s235 = scalar_select %p234, %s20, 1
      %p236 = scmp.lt.s32.totalorder %s233, 1
      %s237 = scalar_select %p236, %s233, 1
      %s238 = smul.addr %s235, 4
      %s239 = sadd.s32 %s237, %s238
      %s240 = smul.addr %s239, 4
      %s241 = scalar_lea.vmem %s0, %s240
      %s242 = smul.u32 2, %s19
      %s243 = smul.u32 2, %s19
      %p244 = scmp.lt.s32.totalorder %s243, 1
      %s245 = scalar_select %p244, %s243, 1
      %s246 = smul.addr %s245, 8
      %s247 = scalar_lea.vmem %s3, %s246
      %s248 = smul.u32 2, %s19
      %s249 = smul.u32 2, %s19
      %p250 = scmp.lt.s32.totalorder %s20, 1
      %s251 = scalar_select %p250, %s20, 1
      %p252 = scmp.lt.s32.totalorder %s249, 1
      %s253 = scalar_select %p252, %s249, 1
      %s254 = smul.addr %s251, 6
      %s255 = sadd.s32 %s253, %s254
      %s256 = smul.addr %s255, 8
      %s257 = scalar_lea.vmem %s4, %s256
      %s258 = smul.u32 2, %s19
      %v260 = vld [vmem:[%s1] sm:$0xf]
      %v261 = vld [vmem:[%s1 + $0x4] sm:$0xf]
      %v262 = vld [vmem:[%s1 + $0x8] sm:$0xf]
      %v263 = vld [vmem:[%s241] sm:$0xff]
      %v264 = vld [vmem:[%s241 + $0x8] sm:$0xff]
      %v265 = vld [vmem:[%s2] sm:$0xff]
      %v266 = vld [vmem:[%s2 + $0x8] sm:$0xff]
      %v267 = vld [vmem:[%s2 + $0x10] sm:$0xff]
      %269 = vset.pattern.permute.xlu0 0
      %270 = vperm.xlu0 %269, %v265
      %v271 = vpop.permute.xlu0 %270
      %274 = vset.pattern.permute.xlu0 0
      %275 = vperm.xlu0 %274, %v266
      %v276 = vpop.permute.xlu0 %275
      %279 = vset.pattern.permute.xlu0 0
      %280 = vperm.xlu0 %279, %v267
      %v281 = vpop.permute.xlu0 %280
      %v286 = vunpack.c.l.b16 %v260
      %v287 = vunpack.c.l.b16 %v261
      %v288 = vunpack.c.l.b16 %v262
      %v289 = vpack.c.b16 %v287, %v286
      %v290 = vpack.c.b16 %v288, %v288
      %v293 = vunpack.c.l.b16 %v263
      %v294 = vunpack.c.h.b16 %v263
      %v295 = vunpack.c.l.b16 %v264
      %v296 = vunpack.c.h.b16 %v264
      %v297 = vpack.c.b16 %v295, %v293
      %v298 = vpack.c.b16 %v296, %v294
      %vm301 = vcmask 130048
      %v303 = vsel %vm301, %v289, 0
      %v306 = vsel %vm301, %v290, 0
      %308 = vmatprep.subr.bf16.mxu0 0
      %309 = vmatpush1.bf16.msra.mxu0 0
      %310 = vmatprep.subr.bf16.mxu0 0
      %311 = vmatpush1.bf16.msra.mxu0 0
      %312 = vmatprep.subr.bf16.mxu0 0
      %313 = vmatpush1.bf16.msra.mxu0 0
      %314 = vmatprep.subr.bf16.mxu0 0
      %315 = vmatpush1.bf16.msra.mxu0 0
      %316 = vmatprep.subr.bf16.mxu0 0
      %317 = vmatpush1.bf16.msra.mxu0 0
      %318 = vmatprep.subr.bf16.mxu0 0
      %319 = vmatpush1.bf16.msra.mxu0 0
      %320 = vmatprep.subr.bf16.mxu0 0
      %321 = vmatpush1.bf16.msra.mxu0 0
      %322 = vmatprep.subr.bf16.mxu0 %v298
      %323 = vmatpush1.bf16.msra.mxu0 %v297
      %324 = vmatprep.subr.bf16.mxu0 0
      %325 = vmatpush2.bf16.msra.mxu0 0
      %326 = vmatprep.subr.bf16.mxu0 0
      %327 = vmatpush2.bf16.msra.mxu0 0
      %328 = vmatprep.subr.bf16.mxu0 0
      %329 = vmatpush2.bf16.msra.mxu0 0
      %330 = vmatprep.subr.bf16.mxu0 0
      %331 = vmatpush2.bf16.msra.mxu0 0
      %332 = vmatprep.subr.bf16.mxu0 0
      %333 = vmatpush2.bf16.msra.mxu0 0
      %334 = vmatprep.subr.bf16.mxu0 0
      %335 = vmatpush2.bf16.msra.mxu0 0
      %336 = vmatprep.subr.bf16.mxu0 0
      %337 = vmatpush2.bf16.msra.mxu0 0
      %338 = vmatprep.subr.bf16.mxu0 0
      %339 = vmatpush2.bf16.msra.mxu0 0
      %340 = vmatprep.mubr.bf16.mxu0 0
      %341 = vmatmul.mubr.bf16.gmra.mxu0 %v303
      %v342 = vpop.f32.mrf.mxu0
      %v343 = vadd.f32 %v271, %v342
      %v344 = vpop.f32.mrf.mxu0
      %v345 = vadd.f32 %v271, %v344
      %v346 = vpop.f32.mrf.mxu0
      %v347 = vadd.f32 %v276, %v346
      %v348 = vpop.f32.mrf.mxu0
      %v349 = vadd.f32 %v276, %v348
      %350 = vmatprep.mubr.bf16.mxu0 0
      %351 = vmatmul.mubr.bf16.gmra.mxu0 %v306
      %v352 = vpop.f32.mrf.mxu0
      %v353 = vadd.f32 %v281, %v352
      %v354 = vpop.f32.mrf.mxu0
      %v355 = vadd.f32 %v281, %v354
      %v356 = vpop.f32.mrf.mxu0
      %v357 = vpop.f32.mrf.mxu0
      %358 = vdwg.mxu0
      %v359 = vxor.u32 %v343, 2147483648
      %v360 = vxor.u32 %v345, 2147483648
      %v361 = vxor.u32 %v347, 2147483648
      %v362 = vxor.u32 %v349, 2147483648
      %v363 = vxor.u32 %v353, 2147483648
      %v364 = vxor.u32 %v355, 2147483648
      %v365 = vmul.f32 %v359, 1.442695
      %v366 = vpow.pop %v365
      %v367 = vmul.f32 %v360, 1.442695
      %v368 = vpow.pop %v367
      %v369 = vmul.f32 %v361, 1.442695
      %v370 = vpow.pop %v369
      %v371 = vmul.f32 %v362, 1.442695
      %v372 = vpow.pop %v371
      %v373 = vmul.f32 %v363, 1.442695
      %v374 = vpow.pop %v373
      %v375 = vmul.f32 %v364, 1.442695
      %v376 = vpow.pop %v375
      %v377 = vadd.f32 %v366, 1.0
      %v378 = vadd.f32 %v368, 1.0
      %v379 = vadd.f32 %v370, 1.0
      %v380 = vadd.f32 %v372, 1.0
      %v381 = vadd.f32 %v374, 1.0
      %v382 = vadd.f32 %v376, 1.0
      %v383 = vrcp.pop %v377
      %v384 = vmul.f32 1.0, %v383
      %v385 = vrcp.pop %v378
      %v386 = vmul.f32 1.0, %v385
      %v387 = vrcp.pop %v379
      %v388 = vmul.f32 1.0, %v387
      %v389 = vrcp.pop %v380
      %v390 = vmul.f32 1.0, %v389
      %v391 = vrcp.pop %v381
      %v392 = vmul.f32 1.0, %v391
      %v393 = vrcp.pop %v382
      %v394 = vmul.f32 1.0, %v393
      %v395 = vld [vmem:[%s247] sm:$0xff]
      %v396 = vld [vmem:[%s247 + $0x8] sm:$0xff]
      %v397 = vld [vmem:[%s247 + $0x10] sm:$0xff]
      %v398 = vld [vmem:[%s247 + $0x18] sm:$0xff]
      %v399 = vld [vmem:[%s247 + $0x20] sm:$0xff]
      %v400 = vld [vmem:[%s247 + $0x28] sm:$0xff]
      %s401 = scalar_lea.vmem %s247, 48
      %v402 = vld [vmem:[%s401] sm:$0xff]
      %v403 = vld [vmem:[%s401 + $0x8] sm:$0xff]
      %v404 = vld [vmem:[%s401 + $0x10] sm:$0xff]
      %v405 = vld [vmem:[%s401 + $0x18] sm:$0xff]
      %v406 = vld [vmem:[%s401 + $0x20] sm:$0xff]
      %v407 = vld [vmem:[%s401 + $0x28] sm:$0xff]
      %vm408 = vcmp.ge.f32.partialorder %v395, 3.0
      %vm409 = vcmp.ge.f32.partialorder %v396, 3.0
      %vm410 = vcmp.ge.f32.partialorder %v397, 3.0
      %vm411 = vcmp.ge.f32.partialorder %v398, 3.0
      %vm412 = vcmp.ge.f32.partialorder %v399, 3.0
      %vm413 = vcmp.ge.f32.partialorder %v400, 3.0
      %v414 = vsel %vm408, %v384, 1.0
      %v415 = vsel %vm409, %v386, 1.0
      %v416 = vsel %vm410, %v388, 1.0
      %v417 = vsel %vm411, %v390, 1.0
      %v418 = vsel %vm412, %v392, 1.0
      %v419 = vsel %vm413, %v394, 1.0
      %v420 = vmul.f32 %v414, %v384
      %v421 = vmul.f32 %v415, %v386
      %v422 = vmul.f32 %v416, %v388
      %v423 = vmul.f32 %v417, %v390
      %v424 = vmul.f32 %v418, %v392
      %v425 = vmul.f32 %v419, %v394
      %v426 = vmul.f32 %v420, %v395
      %v427 = vmul.f32 %v421, %v396
      %v428 = vmul.f32 %v422, %v397
      %v429 = vmul.f32 %v423, %v398
      %v430 = vmul.f32 %v424, %v399
      %v431 = vmul.f32 %v425, %v400
      %v432 = vadd.f32 %v426, %v402
      %v433 = vadd.f32 %v427, %v403
      %v434 = vadd.f32 %v428, %v404
      %v435 = vadd.f32 %v429, %v405
      %v436 = vadd.f32 %v430, %v406
      %v437 = vadd.f32 %v431, %v407
      %438 = vst [vmem:[%s257] sm:$0xff] %v432
      %439 = vst [vmem:[%s257 + $0x8] sm:$0xff] %v433
      %440 = vst [vmem:[%s257 + $0x10] sm:$0xff] %v434
      %441 = vst [vmem:[%s257 + $0x18] sm:$0xff] %v435
      %442 = vst [vmem:[%s257 + $0x20] sm:$0xff] %v436
      %443 = vst [vmem:[%s257 + $0x28] sm:$0xff] %v437
      %s444 = smul.u32 2, %s19
      %p445 = scmp.lt.s32.totalorder %s20, 1
      %s446 = scalar_select %p445, %s20, 1
      %p447 = scmp.lt.s32.totalorder %s444, 1
      %s448 = scalar_select %p447, %s444, 1
      %s449 = smul.addr %s446, 6
      %s450 = sadd.s32 %s448, %s449
      %s451 = smul.addr %s450, 8
      %s452 = scalar_lea.vmem %s4, %s451
      // Predicated region
      $region37: #{yolov4_head_forward.3} parent=35 // pred_check
        %p453 = pneg %p143
      $region38: #{yolov4_head_forward.3} parent=35 // pred_check_branch
        %455 = sbr.rel (%p453) target = $region40
      $region39: #{yolov4_head_forward.3} parent=35 // pred_region
        %s456 = smul.u32 2, %s19
      $region40: #{yolov4_head_forward.3} parent=35 // pred_fallthru
        _
    $region36: #{yolov4_head_forward.3} parent=5 // pred_fallthru
      _
    %p457 = scmp.le.s32.totalorder 2, %s10
    // Predicated region
    $region41: #{yolov4_head_forward.3} parent=5 // pred_check
      %p458 = pneg %p457
    $region42: #{yolov4_head_forward.3} parent=5 // pred_check_branch
      %460 = sbr.rel (%p458) target = $region44
    $region43: #{yolov4_head_forward.3} parent=5 // pred_region
      %s461 = ssub.s32 %s10, 2
      // Predicated region
      $region45: #{yolov4_head_forward.3} parent=43 // pred_check
        %p462 = pneg %p149
      $region46: #{yolov4_head_forward.3} parent=43 // pred_check_branch
        %464 = sbr.rel (%p462) target = $region48
      $region47: #{yolov4_head_forward.3} parent=43 // pred_region
        %s465 = smul.u32 2, %s21
        %p466 = scmp.lt.s32.totalorder %s22, 1
        %s467 = scalar_select %p466, %s22, 1
        %p468 = scmp.lt.s32.totalorder %s465, 1
        %s469 = scalar_select %p468, %s465, 1
        %s470 = smul.addr %s467, 6
        %s471 = sadd.s32 %s469, %s470
        %s472 = smul.addr %s471, 8
        %s473 = scalar_lea.vmem %s4, %s472
      $region48: #{yolov4_head_forward.3} parent=43 // pred_fallthru
        _
    $region44: #{yolov4_head_forward.3} parent=5 // pred_fallthru
      _
  $region6: #{yolov4_head_forward.3} parent=0 // loop_footer
    %s14 = sadd.s32 1, %s10
  $region7: #{yolov4_head_forward.3} parent=0 // loop_footer_branch
    %9 = sbr.rel target = $region3
  $region8: #{yolov4_head_forward.3} parent=0 // loop_exit
    _

// kernel: yolov4_head_forward.4
$region0: #{yolov4_head_forward.4}
  #allocation0 [shape = 'u32[]', space=smem, size = 0x4, offset = 0x4, fixed_abs, tag = 'smem constant byte address 0x4 - core index']
  #allocation1 [shape = 'u32[144,128]{1,0:T(1,128)}', space=vmem, size = 0x12000, scoped, tag = 'internal scratch']
  %s0 = inlined_call_operand.vmem [shape: bf16[2,16,128], index: 0, kind: input, shape index: {}]
  %s1 = inlined_call_operand.vmem [shape: bf16[24,16], index: 1, kind: input, shape index: {}]
  %s2 = inlined_call_operand.vmem [shape: f32[24,1], index: 2, kind: input, shape index: {}]
  %s3 = inlined_call_operand.vmem [shape: f32[2,24,128], index: 3, kind: input, shape index: {}]
  %s4 = inlined_call_operand.vmem [shape: f32[2,24,128], index: 4, kind: output, shape index: {}]
  %s5 = sld [smem:[#allocation0]]
  $region49: #{yolov4_head_forward.4} parent=0
    _
  %s7 = ssub.s32 1, %s5
  %s8 = scalar_select 0, %s7, %s5
  loop: start=0, step=1, limit=4
  $region2: #{yolov4_head_forward.4} parent=0 // loop_pre_header
    _
  $region3: #{yolov4_head_forward.4} parent=0 // loop_header
    %s10 = sphi 0, %s14
    %p11 = scmp.ge.s32.totalorder %s10, 4
    %s17 = sphi 0, %s29
    %s18 = sphi 0, %s25
    %s19 = sphi 0, %s17
    %s20 = sphi 0, %s18
    %s21 = sphi 0, %s19
    %s22 = sphi 0, %s20
    %s34 = sphi 0, %s36
    %s37 = sphi 0, %s34
    %s38 = sphi 0, %s37
    %s54 = sphi 0, %s38
    %s58 = sphi 0, %s58
    %s60 = sphi 0, %s58
    %s61 = sphi 0, %s60
    %s75 = sphi 0, %s61
    %s79 = sphi 0, %s79
    %s81 = sphi 0, %s79
    %s82 = sphi 0, %s81
    %s96 = sphi 0, %s82
    %s102 = sphi 0, %s104
    %s105 = sphi 0, %s102
    %s106 = sphi 0, %s105
    %s122 = sphi 0, %s106
    %s130 = sphi 0, %s132
    %s133 = sphi 0, %s130
    %s134 = sphi 0, %s133
    %s150 = sphi 0, %s134
  $region4: #{yolov4_head_forward.4} parent=0 // loop_header_branch
    %13 = sbr.rel (%p11) target = $region8
  $region5: #{yolov4_head_forward.4} parent=0 // loop_body
    %s15 = ssub.s32 %s10, 1
    %s16 = ssub.s32 %s10, 2
    %s23 = sadd.s32 1, %s18
    %p24 = scmp.ge.s32.totalorder %s23, 2
    %s25 = scalar_select %p24, 0, %s23
    %s26 = sadd.s32 1, %s17
    %s27 = scalar_select %p24, %s26, %s17
    %p28 = scmp.ge.s32.totalorder %s27, 1
    %s29 = scalar_select %p28, 0, %s27
    %s30 = ssub.s32 %s18, %s25
    %s31 = ssub.s32 %s17, %s29
    %s32 = sor.u32 %s30, %s31
    %p33 = scmp.eq.s32.totalorder %s32, 0
    %s35 = sadd.s32 %s34, 1
    %s36 = scalar_select %p33, %s34, %s35
    %p39 = pneg %p33
    %p40 = scmp.eq.s32.totalorder %s10, 1
    %p41 = por %p39, %p40
    %p42 = scmp.ne.s32.totalorder %s34, %s37
    %p43 = scmp.eq.s32.totalorder %s10, 0
    %p44 = por %p42, %p43
    %p45 = scmp.ne.s32.totalorder %s34, %s37
    %p46 = scmp.eq.s32.totalorder %s15, 1
    %p47 = por %p45, %p46
    %p48 = scmp.ne.s32.totalorder %s37, %s38
    %p49 = scmp.eq.s32.totalorder %s15, 0
    %p50 = por %p48, %p49
    %p51 = scmp.ne.s32.totalorder %s37, %s38
    %p52 = scmp.eq.s32.totalorder %s16, 1
    %p53 = por %p51, %p52
    %p55 = scmp.ne.s32.totalorder %s38, %s54
    %p56 = scmp.eq.s32.totalorder %s16, 0
    %p57 = por %p55, %p56
    %s59 = sadd.s32 %s58, 1
    %p62 = scmp.eq.s32.totalorder %s10, 1
    %p63 = scmp.ne.s32.totalorder %s58, %s60
    %p64 = scmp.eq.s32.totalorder %s10, 0
    %p65 = por %p63, %p64
    %p66 = scmp.ne.s32.totalorder %s58, %s60
    %p67 = scmp.eq.s32.totalorder %s15, 1
    %p68 = por %p66, %p67
    %p69 = scmp.ne.s32.totalorder %s60, %s61
    %p70 = scmp.eq.s32.totalorder %s15, 0
    %p71 = por %p69, %p70
    %p72 = scmp.ne.s32.totalorder %s60, %s61
    %p73 = scmp.eq.s32.totalorder %s16, 1
    %p74 = por %p72, %p73
    %p76 = scmp.ne.s32.totalorder %s61, %s75
    %p77 = scmp.eq.s32.totalorder %s16, 0
    %p78 = por %p76, %p77
    %s80 = sadd.s32 %s79, 1
    %p83 = scmp.eq.s32.totalorder %s10, 1
    %p84 = scmp.ne.s32.totalorder %s79, %s81
    %p85 = scmp.eq.s32.totalorder %s10, 0
    %p86 = por %p84, %p85
    %p87 = scmp.ne.s32.totalorder %s79, %s81
    %p88 = scmp.eq.s32.totalorder %s15, 1
    %p89 = por %p87, %p88
    %p90 = scmp.ne.s32.totalorder %s81, %s82
    %p91 = scmp.eq.s32.totalorder %s15, 0
    %p92 = por %p90, %p91
    %p93 = scmp.ne.s32.totalorder %s81, %s82
    %p94 = scmp.eq.s32.totalorder %s16, 1
    %p95 = por %p93, %p94
    %p97 = scmp.ne.s32.totalorder %s82, %s96
    %p98 = scmp.eq.s32.totalorder %s16, 0
    %p99 = por %p97, %p98
    %s100 = ssub.s32 %s17, %s29
    %p101 = scmp.eq.s32.totalorder %s100, 0
    %s103 = sadd.s32 %s102, 1
    %s104 = scalar_select %p101, %s102, %s103
    %p107 = pneg %p101
    %p108 = scmp.eq.s32.totalorder %s10, 1
    %p109 = por %p107, %p108
    %p110 = scmp.ne.s32.totalorder %s102, %s105
    %p111 = scmp.eq.s32.totalorder %s10, 0
    %p112 = por %p110, %p111
    %p113 = scmp.ne.s32.totalorder %s102, %s105
    %p114 = scmp.eq.s32.totalorder %s15, 1
    %p115 = por %p113, %p114
    %p116 = scmp.ne.s32.totalorder %s105, %s106
    %p117 = scmp.eq.s32.totalorder %s15, 0
    %p118 = por %p116, %p117
    %p119 = scmp.ne.s32.totalorder %s105, %s106
    %p120 = scmp.eq.s32.totalorder %s16, 1
    %p121 = por %p119, %p120
    %p123 = scmp.ne.s32.totalorder %s106, %s122
    %p124 = scmp.eq.s32.totalorder %s16, 0
    %p125 = por %p123, %p124
    %s126 = ssub.s32 %s18, %s25
    %s127 = ssub.s32 %s17, %s29
    %s128 = sor.u32 %s126, %s127
    %p129 = scmp.eq.s32.totalorder %s128, 0
    %s131 = sadd.s32 %s130, 1
    %s132 = scalar_select %p129, %s130, %s131
    %p135 = pneg %p129
    %p136 = scmp.eq.s32.totalorder %s10, 1
    %p137 = por %p135, %p136
    %p138 = scmp.ne.s32.totalorder %s130, %s133
    %p139 = scmp.eq.s32.totalorder %s10, 0
    %p140 = por %p138, %p139
    %p141 = scmp.ne.s32.totalorder %s130, %s133
    %p142 = scmp.eq.s32.totalorder %s15, 1
    %p143 = por %p141, %p142
    %p144 = scmp.ne.s32.totalorder %s133, %s134
    %p145 = scmp.eq.s32.totalorder %s15, 0
    %p146 = por %p144, %p145
    %p147 = scmp.ne.s32.totalorder %s133, %s134
    %p148 = scmp.eq.s32.totalorder %s16, 1
    %p149 = por %p147, %p148
    %p151 = scmp.ne.s32.totalorder %s134, %s150
    %p152 = scmp.eq.s32.totalorder %s16, 0
    %p153 = por %p151, %p152
    %p154 = scmp.le.s32.totalorder 1, %s10
    %p155 = scmp.lt.s32.totalorder %s10, 3
    %p156 = pnand %p154, %p155
    %p157 = pneg %p156
    // Predicated region
    $region9: #{yolov4_head_forward.4} parent=5 // pred_check
      _
    $region10: #{yolov4_head_forward.4} parent=5 // pred_check_branch
      %159 = sbr.rel (%p156) target = $region12
    $region11: #{yolov4_head_forward.4} parent=5 // pred_region
      %s160 = ssub.s32 %s10, 1
      // Predicated region
      $region13: #{yolov4_head_forward.4} parent=11 // pred_check
        %p161 = pneg %p71
      $region14: #{yolov4_head_forward.4} parent=11 // pred_check_branch
        %163 = sbr.rel (%p161) target = $region16
      $region15: #{yolov4_head_forward.4} parent=11 // pred_region
        _
      $region16: #{yolov4_head_forward.4} parent=11 // pred_fallthru
        _
      // Predicated region
      $region17: #{yolov4_head_forward.4} parent=11 // pred_check
        %p164 = pneg %p92
      $region18: #{yolov4_head_forward.4} parent=11 // pred_check_branch
        %166 = sbr.rel (%p164) target = $region20
      $region19: #{yolov4_head_forward.4} parent=11 // pred_region
        _
      $region20: #{yolov4_head_forward.4} parent=11 // pred_fallthru
        _
      // Predicated region
      $region21: #{yolov4_head_forward.4} parent=11 // pred_check
        %p167 = pneg %p118
      $region22: #{yolov4_head_forward.4} parent=11 // pred_check_branch
        %169 = sbr.rel (%p167) target = $region24
      $region23: #{yolov4_head_forward.4} parent=11 // pred_region
        %p170 = scmp.lt.s32.totalorder %s19, 0
        %s171 = scalar_select %p170, %s19, 0
        %s172 = smul.addr %s171, 8
        %s173 = scalar_lea.vmem %s3, %s172
      $region24: #{yolov4_head_forward.4} parent=11 // pred_fallthru
        _
    $region12: #{yolov4_head_forward.4} parent=5 // pred_fallthru
      _
    %p174 = scmp.lt.s32.totalorder %s10, 2
    // Predicated region
    $region25: #{yolov4_head_forward.4} parent=5 // pred_check
      %p175 = pneg %p174
    $region26: #{yolov4_head_forward.4} parent=5 // pred_check_branch
      %177 = sbr.rel (%p175) target = $region28
    $region27: #{yolov4_head_forward.4} parent=5 // pred_region
      // Predicated region
      $region29: #{yolov4_head_forward.4} parent=27 // pred_check
        %p178 = pneg %p44
      $region30: #{yolov4_head_forward.4} parent=27 // pred_check_branch
        %180 = sbr.rel (%p178) target = $region32
      $region31: #{yolov4_head_forward.4} parent=27 // pred_region
        %p181 = scmp.lt.s32.totalorder %s18, 1
        %s182 = scalar_select %p181, %s18, 1
        %p183 = scmp.lt.s32.totalorder %s17, 0
        %s184 = scalar_select %p183, %s17, 0
        %s185 = smul.addr %s182, 2
        %s186 = sadd.s32 %s184, %s185
        %s187 = smul.addr %s186, 4
        %s188 = scalar_lea.vmem %s0, %s187
      $region32: #{yolov4_head_forward.4} parent=27 // pred_fallthru
        _
    $region28: #{yolov4_head_forward.4} parent=5 // pred_fallthru
      _
    %p189 = scmp.le.s32.totalorder 1, %s10
    %p190 = scmp.lt.s32.totalorder %s10, 3
    %p191 = pnand %p189, %p190
    %p192 = pneg %p191
    // Predicated region
    $region33: #{yolov4_head_forward.4} parent=5 // pred_check
      _
    $region34: #{yolov4_head_forward.4} parent=5 // pred_check_branch
      %194 = sbr.rel (%p191) target = $region36
    $region35: #{yolov4_head_forward.4} parent=5 // pred_region
      %s195 = ssub.s32 %s10, 1
      %p196 = scmp.lt.s32.totalorder %s20, 1
      %s197 = scalar_select %p196, %s20, 1
      %p198 = scmp.lt.s32.totalorder %s19, 0
      %s199 = scalar_select %p198, %s19, 0
      %s200 = smul.addr %s197, 2
      %s201 = sadd.s32 %s199, %s200
      %s202 = smul.addr %s201, 4
      %s203 = scalar_lea.vmem %s0, %s202
      %p204 = pneg %p50
      %p205 = pneg %p47
      %p206 = pneg %p71
      %p207 = pneg %p68
      %p208 = pneg %p92
      %p209 = pneg %p89
      %p210 = scmp.lt.s32.totalorder %s19, 0
      %s211 = scalar_select %p210, %s19, 0
      %s212 = smul.addr %s211, 8
      %s213 = scalar_lea.vmem %s3, %s212
      %p214 = pneg %p118
      %p215 = pneg %p115
      %p216 = pneg %p146
      %p217 = pneg %p143
      %p218 = scmp.lt.s32.totalorder %s20, 1
      %s219 = scalar_select %p218, %s20, 1
      %p220 = scmp.lt.s32.totalorder %s19, 0
      %s221 = scalar_select %p220, %s19, 0
      %s222 = smul.addr %s219, 3
      %s223 = sadd.s32 %s221, %s222
      %s224 = smul.addr %s223, 8
      %s225 = scalar_lea.vmem %s4, %s224
      %p226 = scmp.lt.s32.totalorder %s20, 1
      %s227 = scalar_select %p226, %s20, 1
      %p228 = scmp.lt.s32.totalorder %s19, 0
      %s229 = scalar_select %p228, %s19, 0
      %s230 = smul.addr %s227, 2
      %s231 = sadd.s32 %s229, %s230
      %s232 = smul.addr %s231, 4
      %s233 = scalar_lea.vmem %s0, %s232
      %p234 = scmp.lt.s32.totalorder %s19, 0
      %s235 = scalar_select %p234, %s19, 0
      %s236 = smul.addr %s235, 8
      %s237 = scalar_lea.vmem %s3, %s236
      %p238 = scmp.lt.s32.totalorder %s20, 1
      %s239 = scalar_select %p238, %s20, 1
      %p240 = scmp.lt.s32.totalorder %s19, 0
      %s241 = scalar_select %p240, %s19, 0
      %s242 = smul.addr %s239, 3
      %s243 = sadd.s32 %s241, %s242
      %s244 = smul.addr %s243, 8
      %s245 = scalar_lea.vmem %s4, %s244
      %v247 = vld [vmem:[%s1] sm:$0xf]
      %v248 = vld [vmem:[%s1 + $0x4] sm:$0xf]
      %v249 = vld [vmem:[%s1 + $0x8] sm:$0xf]
      %v250 = vld [vmem:[%s233] sm:$0xf]
      %v251 = vld [vmem:[%s233 + $0x4] sm:$0xf]
      %v252 = vld [vmem:[%s2] sm:$0xff]
      %v253 = vld [vmem:[%s2 + $0x8] sm:$0xff]
      %v254 = vld [vmem:[%s2 + $0x10] sm:$0xff]
      %256 = vset.pattern.permute.xlu0 0
      %257 = vperm.xlu0 %256, %v252
      %v258 = vpop.permute.xlu0 %257
      %261 = vset.pattern.permute.xlu0 0
      %262 = vperm.xlu0 %261, %v253
      %v263 = vpop.permute.xlu0 %262
      %266 = vset.pattern.permute.xlu0 0
      %267 = vperm.xlu0 %266, %v254
      %v268 = vpop.permute.xlu0 %267
      %v273 = vunpack.c.l.b16 %v247
      %v274 = vunpack.c.l.b16 %v248
      %v275 = vunpack.c.l.b16 %v249
      %v276 = vpack.c.b16 %v274, %v273
      %v277 = vpack.c.b16 %v275, %v275
      %v280 = vunpack.c.l.b16 %v250
      %v281 = vunpack.c.l.b16 %v251
      %v282 = vpack.c.b16 %v281, %v280
      %vm284 = vcmask 130048
      %v286 = vsel %vm284, %v276, 0
      %v289 = vsel %vm284, %v277, 0
      %291 = vmatprep.subr.bf16.mxu0 0
      %292 = vmatpush1.bf16.msra.mxu0 0
      %293 = vmatprep.subr.bf16.mxu0 0
      %294 = vmatpush1.bf16.msra.mxu0 0
      %295 = vmatprep.subr.bf16.mxu0 0
      %296 = vmatpush1.bf16.msra.mxu0 0
      %297 = vmatprep.subr.bf16.mxu0 0
      %298 = vmatpush1.bf16.msra.mxu0 0
      %299 = vmatprep.subr.bf16.mxu0 0
      %300 = vmatpush1.bf16.msra.mxu0 0
      %301 = vmatprep.subr.bf16.mxu0 0
      %302 = vmatpush1.bf16.msra.mxu0 0
      %303 = vmatprep.subr.bf16.mxu0 0
      %304 = vmatpush1.bf16.msra.mxu0 0
      %305 = vmatprep.subr.bf16.mxu0 0
      %306 = vmatpush1.bf16.msra.mxu0 %v282
      %307 = vmatprep.subr.bf16.mxu0 0
      %308 = vmatpush2.bf16.msra.mxu0 0
      %309 = vmatprep.subr.bf16.mxu0 0
      %310 = vmatpush2.bf16.msra.mxu0 0
      %311 = vmatprep.subr.bf16.mxu0 0
      %312 = vmatpush2.bf16.msra.mxu0 0
      %313 = vmatprep.subr.bf16.mxu0 0
      %314 = vmatpush2.bf16.msra.mxu0 0
      %315 = vmatprep.subr.bf16.mxu0 0
      %316 = vmatpush2.bf16.msra.mxu0 0
      %317 = vmatprep.subr.bf16.mxu0 0
      %318 = vmatpush2.bf16.msra.mxu0 0
      %319 = vmatprep.subr.bf16.mxu0 0
      %320 = vmatpush2.bf16.msra.mxu0 0
      %321 = vmatprep.subr.bf16.mxu0 0
      %322 = vmatpush2.bf16.msra.mxu0 0
      %323 = vmatprep.mubr.bf16.mxu0 0
      %324 = vmatmul.mubr.bf16.gmra.mxu0 %v286
      %v325 = vpop.f32.mrf.mxu0
      %v326 = vadd.f32 %v258, %v325
      %v327 = vpop.f32.mrf.mxu0
      %v328 = vpop.f32.mrf.mxu0
      %v329 = vadd.f32 %v263, %v328
      %v330 = vpop.f32.mrf.mxu0
      %331 = vmatprep.mubr.bf16.mxu0 0
      %332 = vmatmul.mubr.bf16.gmra.mxu0 %v289
      %v333 = vpop.f32.mrf.mxu0
      %v334 = vadd.f32 %v268, %v333
      %v335 = vpop.f32.mrf.mxu0
      %v336 = vpop.f32.mrf.mxu0
      %v337 = vpop.f32.mrf.mxu0
      %338 = vdwg.mxu0
      %v339 = vxor.u32 %v326, 2147483648
      %v340 = vxor.u32 %v329, 2147483648
      %v341 = vxor.u32 %v334, 2147483648
      %v342 = vmul.f32 %v339, 1.442695
      %v343 = vpow.pop %v342
      %v344 = vmul.f32 %v340, 1.442695
      %v345 = vpow.pop %v344
      %v346 = vmul.f32 %v341, 1.442695
      %v347 = vpow.pop %v346
      %v348 = vadd.f32 %v343, 1.0
      %v349 = vadd.f32 %v345, 1.0
      %v350 = vadd.f32 %v347, 1.0
      %v351 = vrcp.pop %v348
      %v352 = vmul.f32 1.0, %v351
      %v353 = vrcp.pop %v349
      %v354 = vmul.f32 1.0, %v353
      %v355 = vrcp.pop %v350
      %v356 = vmul.f32 1.0, %v355
      %v357 = vld [vmem:[%s237] sm:$0xff]
      %v358 = vld [vmem:[%s237 + $0x8] sm:$0xff]
      %v359 = vld [vmem:[%s237 + $0x10] sm:$0xff]
      %s360 = scalar_lea.vmem %s237, 24
      %v361 = vld [vmem:[%s360] sm:$0xff]
      %v362 = vld [vmem:[%s360 + $0x8] sm:$0xff]
      %v363 = vld [vmem:[%s360 + $0x10] sm:$0xff]
      %vm364 = vcmp.ge.f32.partialorder %v357, 3.0
      %vm365 = vcmp.ge.f32.partialorder %v358, 3.0
      %vm366 = vcmp.ge.f32.partialorder %v359, 3.0
      %v367 = vsel %vm364, %v352, 1.0
      %v368 = vsel %vm365, %v354, 1.0
      %v369 = vsel %vm366, %v356, 1.0
      %v370 = vmul.f32 %v367, %v352
      %v371 = vmul.f32 %v368, %v354
      %v372 = vmul.f32 %v369, %v356
      %v373 = vmul.f32 %v370, %v357
      %v374 = vmul.f32 %v371, %v358
      %v375 = vmul.f32 %v372, %v359
      %v376 = vadd.f32 %v373, %v361
      %v377 = vadd.f32 %v374, %v362
      %v378 = vadd.f32 %v375, %v363
      %379 = vst [vmem:[%s245] sm:$0xff] %v376
      %380 = vst [vmem:[%s245 + $0x8] sm:$0xff] %v377
      %381 = vst [vmem:[%s245 + $0x10] sm:$0xff] %v378
      %p382 = scmp.lt.s32.totalorder %s20, 1
      %s383 = scalar_select %p382, %s20, 1
      %p384 = scmp.lt.s32.totalorder %s19, 0
      %s385 = scalar_select %p384, %s19, 0
      %s386 = smul.addr %s383, 3
      %s387 = sadd.s32 %s385, %s386
      %s388 = smul.addr %s387, 8
      %s389 = scalar_lea.vmem %s4, %s388
      // Predicated region
      $region37: #{yolov4_head_forward.4} parent=35 // pred_check
        %p390 = pneg %p143
      $region38: #{yolov4_head_forward.4} parent=35 // pred_check_branch
        %392 = sbr.rel (%p390) target = $region40
      $region39: #{yolov4_head_forward.4} parent=35 // pred_region
        _
      $region40: #{yolov4_head_forward.4} parent=35 // pred_fallthru
        _
    $region36: #{yolov4_head_forward.4} parent=5 // pred_fallthru
      _
    %p393 = scmp.le.s32.totalorder 2, %s10
    // Predicated region
    $region41: #{yolov4_head_forward.4} parent=5 // pred_check
      %p394 = pneg %p393
    $region42: #{yolov4_head_forward.4} parent=5 // pred_check_branch
      %396 = sbr.rel (%p394) target = $region44
    $region43: #{yolov4_head_forward.4} parent=5 // pred_region
      %s397 = ssub.s32 %s10, 2
      // Predicated region
      $region45: #{yolov4_head_forward.4} parent=43 // pred_check
        %p398 = pneg %p149
      $region46: #{yolov4_head_forward.4} parent=43 // pred_check_branch
        %400 = sbr.rel (%p398) target = $region48
      $region47: #{yolov4_head_forward.4} parent=43 // pred_region
        %p401 = scmp.lt.s32.totalorder %s22, 1
        %s402 = scalar_select %p401, %s22, 1
        %p403 = scmp.lt.s32.totalorder %s21, 0
        %s404 = scalar_select %p403, %s21, 0
        %s405 = smul.addr %s402, 3
        %s406 = sadd.s32 %s404, %s405
        %s407 = smul.addr %s406, 8
        %s408 = scalar_lea.vmem %s4, %s407
      $region48: #{yolov4_head_forward.4} parent=43 // pred_fallthru
        _
    $region44: #{yolov4_head_forward.4} parent=5 // pred_fallthru
      _
  $region6: #{yolov4_head_forward.4} parent=0 // loop_footer
    %s14 = sadd.s32 1, %s10
  $region7: #{yolov4_head_forward.4} parent=0 // loop_footer_branch
    %9 = sbr.rel target = $region3
  $region8: #{yolov4_head_forward.4} parent=0 // loop_exit
    _

</llo_original>
